<compile_context>
chip_gen: v7x
topology: tpu7x:2x2x1
jax: 0.10.0
libtpu: 0.0.40
codegen_flags: <defaults>
</compile_context>

<pallas_src>
import functools

import jax
import jax.numpy as jnp
from jax.experimental import pallas as pl
from jax.experimental.pallas import tpu as pltpu


def _rmsnorm_kernel(x_ref, w_ref, o_ref, *, eps):
    # x_ref: (tile_rows, hidden)   w_ref: (1, hidden)   o_ref: (tile_rows, hidden)
    x = x_ref[...].astype(jnp.float32)
    w = w_ref[...].astype(jnp.float32)
    var = jnp.mean(x * x, axis=-1, keepdims=True)          # (tile_rows, 1), f32
    # eps is added AFTER the sqrt (module semantics) -> cannot fold into rsqrt.
    # The divide is column-only, so its VALU cost is ~1/hidden of a full tile.
    inv = 1.0 / (jnp.sqrt(var) + eps)                       # (tile_rows, 1)
    o_ref[...] = ((x * inv) * w).astype(o_ref.dtype)


def _round_down(x, m):
    return (x // m) * m


def _round_up(x, m):
    return ((x + m - 1) // m) * m


def rmsnorm(hidden_states, weight, eps=1e-6, *, tile_rows=None):
    """hidden_states: (..., hidden); weight: (hidden,)."""
    orig_shape = hidden_states.shape
    hidden = orig_shape[-1]
    x2d = hidden_states.reshape(-1, hidden)
    rows = x2d.shape[0]

    in_dtype = hidden_states.dtype
    w_dtype = weight.dtype
    out_dtype = jnp.result_type(in_dtype, w_dtype)          # torch promotion rule
    in_item = jnp.dtype(in_dtype).itemsize
    out_item = jnp.dtype(out_dtype).itemsize
    w_item = jnp.dtype(w_dtype).itemsize

    # Sublane packing factor: 8 rows for 4-byte dtypes, 16 for bf16, 32 for int8.
    sublane = max(8, 32 // in_item, 32 // out_item)

    # --- VMEM-aware tile sizing -------------------------------------------
    try:
        info = pltpu.get_tpu_info()
        vmem_cap = int(getattr(info, "vmem_capacity_bytes", 0)) or (64 << 20)
    except Exception:
        vmem_cap = 64 << 20                                  # conservative (v7x)

    rows_rounded = _round_up(rows, sublane)

    if tile_rows is None:
        # ~35% of VMEM for the double-buffered (in + out) pipeline buffers.
        budget_bytes = int(0.35 * vmem_cap)
        per_row_bytes = 2 * hidden * (in_item + out_item)    # 2 bufs x (in + out)
        tr = max(sublane, budget_bytes // max(per_row_bytes, 1))
        tile_rows = max(sublane, min(2048, _round_down(tr, sublane)))

    # Never exceed the (rounded) row count; keep a sublane multiple.
    tile_rows = max(sublane, min(tile_rows, rows_rounded))
    tile_rows = _round_down(tile_rows, sublane)

    # Keep >= 4 grid steps when possible (pipeline overlap + clean split across
    # v7x's two TensorCores); never collapse to a single step unless rows are
    # smaller than 2 sublane groups.
    max_tiles = rows_rounded // sublane
    target_tiles = min(4, max_tiles)
    cap = max(sublane, _round_down(rows_rounded // target_tiles, sublane))
    tile_rows = min(tile_rows, cap)

    num_tiles = pl.cdiv(rows, tile_rows)                     # ragged last tile OK

    w2d = weight.reshape(1, hidden)                          # keep native dtype

    # Scoped-VMEM limit: cover the pipeline buffers + headroom, bounded by
    # ~62.5% of physical VMEM (== ~40 MiB on v7x, ~80 MiB on v5e/v6e).
    pipeline_bytes = (2 * tile_rows * hidden * (in_item + out_item)
                      + 2 * hidden * w_item)
    vmem_limit = max(32 << 20, int(pipeline_bytes * 1.75))
    vmem_limit = min(vmem_limit, int(vmem_cap * 0.625))

    cost = pl.CostEstimate(
        flops=4 * rows * hidden,
        transcendentals=2 * rows,
        bytes_accessed=rows * hidden * (in_item + out_item) + hidden * w_item,
    )

    kernel = functools.partial(_rmsnorm_kernel, eps=eps)
    out = pl.pallas_call(
        kernel,
        out_shape=jax.ShapeDtypeStruct((rows, hidden), out_dtype),
        grid_spec=pltpu.PrefetchScalarGridSpec(
            num_scalar_prefetch=0,
            grid=(num_tiles,),
            in_specs=[
                pl.BlockSpec((tile_rows, hidden), lambda i: (i, 0)),
                pl.BlockSpec((1, hidden), lambda i: (0, 0)),
            ],
            out_specs=pl.BlockSpec((tile_rows, hidden), lambda i: (i, 0)),
        ),
        compiler_params=pltpu.CompilerParams(
            dimension_semantics=("parallel",),
            vmem_limit_bytes=vmem_limit,
        ),
        cost_estimate=cost,
    )(x2d, w2d)

    return out.reshape(orig_shape[:-1] + (hidden,))


def rmsnorm_ref(hidden_states, weight, eps=1e-6):
    x = hidden_states.astype(jnp.float32)
    var = jnp.mean(x * x, axis=-1, keepdims=True)
    out = weight.astype(jnp.float32) * x / (jnp.sqrt(var) + eps)
    return out.astype(jnp.result_type(hidden_states.dtype, weight.dtype))


if __name__ == "__main__":
    eps = 1e-6

    # Primary small test, matching the module's (batch, seq, hidden) forward.
    batch, seq, hidden = 2, 8, 32
    x = jax.random.normal(jax.random.PRNGKey(0), (batch, seq, hidden),
                          dtype=jnp.float32)
    weight = jnp.ones((hidden,), dtype=jnp.float32)          # nn.Parameter(ones)

    out = jax.block_until_ready(rmsnorm(x, weight, eps))
    expected = rmsnorm_ref(x, weight, eps)
    assert out.shape == x.shape
    assert out.dtype == expected.dtype
    assert jnp.allclose(out, expected, atol=1e-5, rtol=1e-5)

    # Ragged row count (batch*seq = 15, not a tile multiple) with lane-dense
    # hidden=128 — exercises the in-kernel partial-block path (no pad/slice).
    x2 = jax.random.normal(jax.random.PRNGKey(1), (3, 5, 128), dtype=jnp.float32)
    w2 = jax.random.normal(jax.random.PRNGKey(2), (128,), dtype=jnp.float32)
    out2 = jax.block_until_ready(rmsnorm(x2, w2, eps))
    assert jnp.allclose(out2, rmsnorm_ref(x2, w2, eps), atol=1e-5, rtol=1e-5)

    print("KERNEL_OK")
</pallas_src>

<mosaic_0001>
module attributes {stable_mosaic.version = 11 : i64} {
  func.func @_rmsnorm_kernel(%arg0: i32, %arg1: memref<8x32xf32, #tpu.memory_space<vmem>>, %arg2: memref<1x32xf32, #tpu.memory_space<vmem>>, %arg3: memref<8x32xf32, #tpu.memory_space<vmem>>) attributes {dimension_semantics = [#tpu.dimension_semantics<parallel>], iteration_bounds = array<i64: 2>, scalar_prefetch = 0 : i64, scratch_operands = 0 : i64, tpu.core_type = #tpu.core_type<tc>, window_params = [{transform_indices = @transform_0, window_bounds = array<i64: 8, 32>}, {pipeline_mode = #tpu.pipeline_mode<synchronous>, transform_indices = @transform_1, window_bounds = array<i64: 1, 32>}, {transform_indices = @transform_2, window_bounds = array<i64: 8, 32>}]} {
    %c0 = arith.constant 0 : index
    %c0_0 = arith.constant 0 : index
    %0 = vector.load %arg1[%c0, %c0_0] : memref<8x32xf32, #tpu.memory_space<vmem>>, vector<8x32xf32>
    %c0_1 = arith.constant 0 : index
    %c0_2 = arith.constant 0 : index
    %1 = vector.load %arg2[%c0_1, %c0_2] : memref<1x32xf32, #tpu.memory_space<vmem>>, vector<1x32xf32>
    %2 = arith.mulf %0, %0 : vector<8x32xf32>
    %cst = arith.constant dense<0.000000e+00> : vector<8xf32>
    %3 = vector.multi_reduction <add>, %2, %cst [1] : vector<8x32xf32> to vector<8xf32>
    %4 = vector.shape_cast %3 : vector<8xf32> to vector<8x1xf32>
    %cst_3 = arith.constant 3.200000e+01 : f32
    %5 = vector.broadcast %cst_3 : f32 to vector<8x1xf32>
    %6 = arith.divf %4, %5 : vector<8x1xf32>
    %7 = math.sqrt %6 : vector<8x1xf32>
    %cst_4 = arith.constant 9.99999997E-7 : f32
    %8 = vector.broadcast %cst_4 : f32 to vector<8x1xf32>
    %9 = arith.addf %7, %8 : vector<8x1xf32>
    %cst_5 = arith.constant 1.000000e+00 : f32
    %10 = vector.broadcast %cst_5 : f32 to vector<8x1xf32>
    %11 = arith.divf %10, %9 : vector<8x1xf32>
    %12 = vector.broadcast %11 : vector<8x1xf32> to vector<8x32xf32>
    %13 = arith.mulf %0, %12 : vector<8x32xf32>
    %14 = vector.broadcast %1 : vector<1x32xf32> to vector<8x32xf32>
    %15 = arith.mulf %13, %14 : vector<8x32xf32>
    %c0_6 = arith.constant 0 : index
    %c0_7 = arith.constant 0 : index
    %16 = vector.load %arg3[%c0_6, %c0_7] : memref<8x32xf32, #tpu.memory_space<vmem>>, vector<8x32xf32>
    tpu.vector_store %arg3[%c0_6, %c0_7], %15 {strides = array<i32>} : memref<8x32xf32, #tpu.memory_space<vmem>>, vector<8x32xf32>,
    return
  }
  func.func @transform_0(%arg0: i32) -> (i32, i32) {
    %c0_i32 = arith.constant 0 : i32
    %c0_i32_0 = arith.constant 0 : i32
    return %arg0, %c0_i32 : i32, i32
  }
  func.func @transform_1(%arg0: i32) -> (i32, i32) {
    %c0_i32 = arith.constant 0 : i32
    %c0_i32_0 = arith.constant 0 : i32
    %c0_i32_1 = arith.constant 0 : i32
    return %c0_i32, %c0_i32_0 : i32, i32
  }
  func.func @transform_2(%arg0: i32) -> (i32, i32) {
    %c0_i32 = arith.constant 0 : i32
    %c0_i32_0 = arith.constant 0 : i32
    return %arg0, %c0_i32 : i32, i32
  }
}

</mosaic_0001>

<llo_original>
// kernel: tpu_custom_call.1
$region0: #{tpu_custom_call.1}
  #allocation0 [shape = 'u32[]', space=smem, size = 0x4, offset = 0x4, fixed_abs, tag = 'smem constant byte address 0x4 - core index']
  #allocation1 [shape = 'u32[144,128]{1,0:T(1,128)}', space=vmem, size = 0x12000, scoped, tag = 'internal scratch']
  %s0 = inlined_call_operand.hbm [shape: f32[16,32], index: 0, kind: input, shape index: {}]
  %s1 = inlined_call_operand.vmem [shape: f32[1,32], index: 1, kind: input, shape index: {}]
  %s2 = inlined_call_operand.hbm [shape: f32[16,32], index: 2, kind: output, shape index: {}]
  %s3 = sld [smem:[#allocation0]]
  $region45: #{tpu_custom_call.1} parent=0
    _
  %s5 = ssub.s32 1, %s3
  %s6 = scalar_select 0, %s5, %s3
  $region1: #{tpu_custom_call.1} parent=0
    #allocation2 [shape = 'u8[8192]{0}', space=vmem, size = 0x2000, scoped, tag = 'input window, operand 0']
    #allocation3 [shape = 's32[2]{0}', space=sflag, size = 0x8, scoped, tag = 'scoped memory for tpu_custom_call.1']
    #allocation4 [shape = 's32[2]{0}', space=sflag, size = 0x8, scoped, tag = 'scoped memory for tpu_custom_call.1']
    #allocation5 [shape = 'u8[8192]{0}', space=vmem, size = 0x2000, scoped, tag = 'output window, operand 0']
    %7 = vsyncpa [#allocation3], 0
    %s8 = scalar_lea.sflag [#allocation3], 1
    %9 = vsyncpa %s8, 0
    %10 = vsyncpa [#allocation4], 0
    %s11 = scalar_lea.sflag [#allocation4], 1
    %12 = vsyncpa %s11, 0
    loop: start=0, step=1, limit=4
    $region2: #{tpu_custom_call.1} parent=1 // loop_pre_header
      _
    $region3: #{tpu_custom_call.1} parent=1 // loop_header
      %s14 = sphi 0, %s18
      %p15 = scmp.ge.s32.totalorder %s14, 4
      %s24 = sphi 0, %s26
      %s27 = sphi 0, %s24
      %s28 = sphi 0, %s27
      %s44 = sphi 0, %s28
      %s48 = sphi 0, %s48
      %s50 = sphi 0, %s48
      %s51 = sphi 0, %s50
      %s65 = sphi 0, %s51
      %s71 = sphi 0, %s73
      %s74 = sphi 0, %s71
      %s75 = sphi 0, %s74
      %s91 = sphi 0, %s75
    $region4: #{tpu_custom_call.1} parent=1 // loop_header_branch
      %17 = sbr.rel (%p15) target = $region8
    $region5: #{tpu_custom_call.1} parent=1 // loop_body
      %s19 = ssub.s32 %s14, 1
      %s20 = ssub.s32 %s14, 2
      %s21 = sadd.s32 %s14, 1
      %s22 = ssub.s32 %s14, %s21
      %p23 = scmp.eq.s32.totalorder %s22, 0
      %s25 = sadd.s32 %s24, 1
      %s26 = scalar_select %p23, %s24, %s25
      %p29 = pneg %p23
      %p30 = scmp.eq.s32.totalorder %s14, 1
      %p31 = por %p29, %p30
      %p32 = scmp.ne.s32.totalorder %s24, %s27
      %p33 = scmp.eq.s32.totalorder %s14, 0
      %p34 = por %p32, %p33
      %p35 = scmp.ne.s32.totalorder %s24, %s27
      %p36 = scmp.eq.s32.totalorder %s19, 1
      %p37 = por %p35, %p36
      %p38 = scmp.ne.s32.totalorder %s27, %s28
      %p39 = scmp.eq.s32.totalorder %s19, 0
      %p40 = por %p38, %p39
      %p41 = scmp.ne.s32.totalorder %s27, %s28
      %p42 = scmp.eq.s32.totalorder %s20, 1
      %p43 = por %p41, %p42
      %p45 = scmp.ne.s32.totalorder %s28, %s44
      %p46 = scmp.eq.s32.totalorder %s20, 0
      %p47 = por %p45, %p46
      %s49 = sadd.s32 %s48, 1
      %p52 = scmp.eq.s32.totalorder %s14, 1
      %p53 = scmp.ne.s32.totalorder %s48, %s50
      %p54 = scmp.eq.s32.totalorder %s14, 0
      %p55 = por %p53, %p54
      %p56 = scmp.ne.s32.totalorder %s48, %s50
      %p57 = scmp.eq.s32.totalorder %s19, 1
      %p58 = por %p56, %p57
      %p59 = scmp.ne.s32.totalorder %s50, %s51
      %p60 = scmp.eq.s32.totalorder %s19, 0
      %p61 = por %p59, %p60
      %p62 = scmp.ne.s32.totalorder %s50, %s51
      %p63 = scmp.eq.s32.totalorder %s20, 1
      %p64 = por %p62, %p63
      %p66 = scmp.ne.s32.totalorder %s51, %s65
      %p67 = scmp.eq.s32.totalorder %s20, 0
      %p68 = por %p66, %p67
      %s69 = ssub.s32 %s14, %s21
      %p70 = scmp.eq.s32.totalorder %s69, 0
      %s72 = sadd.s32 %s71, 1
      %s73 = scalar_select %p70, %s71, %s72
      %p76 = pneg %p70
      %p77 = scmp.eq.s32.totalorder %s14, 1
      %p78 = por %p76, %p77
      %p79 = scmp.ne.s32.totalorder %s71, %s74
      %p80 = scmp.eq.s32.totalorder %s14, 0
      %p81 = por %p79, %p80
      %p82 = scmp.ne.s32.totalorder %s71, %s74
      %p83 = scmp.eq.s32.totalorder %s19, 1
      %p84 = por %p82, %p83
      %p85 = scmp.ne.s32.totalorder %s74, %s75
      %p86 = scmp.eq.s32.totalorder %s19, 0
      %p87 = por %p85, %p86
      %p88 = scmp.ne.s32.totalorder %s74, %s75
      %p89 = scmp.eq.s32.totalorder %s20, 1
      %p90 = por %p88, %p89
      %p92 = scmp.ne.s32.totalorder %s75, %s91
      %p93 = scmp.eq.s32.totalorder %s20, 0
      %p94 = por %p92, %p93
      %p95 = scmp.le.s32.totalorder 1, %s14
      %p96 = scmp.lt.s32.totalorder %s14, 3
      %p97 = pnand %p95, %p96
      %p98 = pneg %p97
      // Predicated region
      $region9: #{tpu_custom_call.1} parent=5 // pred_check
        _
      $region10: #{tpu_custom_call.1} parent=5 // pred_check_branch
        %100 = sbr.rel (%p97) target = $region12
      $region11: #{tpu_custom_call.1} parent=5 // pred_region
        %s101 = ssub.s32 %s14, 1
        // Predicated region
        $region13: #{tpu_custom_call.1} parent=11 // pred_check
          %p102 = pneg %p61
        $region14: #{tpu_custom_call.1} parent=11 // pred_check_branch
          %104 = sbr.rel (%p102) target = $region16
        $region15: #{tpu_custom_call.1} parent=11 // pred_region
          _
        $region16: #{tpu_custom_call.1} parent=11 // pred_fallthru
          _
      $region12: #{tpu_custom_call.1} parent=5 // pred_fallthru
        _
      %p105 = scmp.lt.s32.totalorder %s14, 2
      // Predicated region
      $region17: #{tpu_custom_call.1} parent=5 // pred_check
        %p106 = pneg %p105
      $region18: #{tpu_custom_call.1} parent=5 // pred_check_branch
        %108 = sbr.rel (%p106) target = $region20
      $region19: #{tpu_custom_call.1} parent=5 // pred_region
        // Predicated region
        $region21: #{tpu_custom_call.1} parent=19 // pred_check
          %p109 = pneg %p34
        $region22: #{tpu_custom_call.1} parent=19 // pred_check_branch
          %111 = sbr.rel (%p109) target = $region24
        $region23: #{tpu_custom_call.1} parent=19 // pred_region
          %s112 = sand.u32 %s24, 1
          %s113 = scalar_lea.sflag [#allocation3], %s112
          %s114 = sand.u32 %s24, 1
          %s115 = smul.addr %s114, 8
          %s116 = scalar_lea.vmem [#allocation2], %s115
          %s118 = ssub.s32 128, 128
          %119 = vsyncadd %s113, %s118
          %s120 = smul.addr %s14, 128
          %s121 = scalar_lea.hbm %s0, %s120
          %s123 = sshll.u32 %s116, 4
          %s124 = int_to_ptr.vmem [resolvable:$true] %s123
          %126 = dma.hbm_to_vmem [thread:$0]  %s121, 128, %s124, %s113
        $region24: #{tpu_custom_call.1} parent=19 // pred_fallthru
          _
      $region20: #{tpu_custom_call.1} parent=5 // pred_fallthru
        _
      %p127 = scmp.le.s32.totalorder 1, %s14
      %p128 = scmp.lt.s32.totalorder %s14, 3
      %p129 = pnand %p127, %p128
      %p130 = pneg %p129
      // Predicated region
      $region25: #{tpu_custom_call.1} parent=5 // pred_check
        _
      $region26: #{tpu_custom_call.1} parent=5 // pred_check_branch
        %132 = sbr.rel (%p129) target = $region28
      $region27: #{tpu_custom_call.1} parent=5 // pred_region
        %s133 = ssub.s32 %s14, 1
        %s134 = sand.u32 %s27, 1
        %s135 = scalar_lea.sflag [#allocation3], %s134
        %s136 = sand.u32 %s27, 1
        %s137 = smul.addr %s136, 8
        %s138 = scalar_lea.vmem [#allocation2], %s137
        // Predicated region
        $region29: #{tpu_custom_call.1} parent=27 // pred_check
          %p139 = pneg %p40
        $region30: #{tpu_custom_call.1} parent=27 // pred_check_branch
          %141 = sbr.rel (%p139) target = $region32
        $region31: #{tpu_custom_call.1} parent=27 // pred_region
          %142 = dma.done %s135, 128
        $region32: #{tpu_custom_call.1} parent=27 // pred_fallthru
          _
        %s143 = sand.u32 %s27, 1
        %s144 = scalar_lea.sflag [#allocation3], %s143
        %s145 = sand.u32 %s27, 1
        %s146 = smul.addr %s145, 8
        %s147 = scalar_lea.vmem [#allocation2], %s146
        %p148 = pneg %p40
        %p149 = pneg %p37
        %p150 = pneg %p61
        %p151 = pneg %p58
        %p152 = pneg %p87
        %p153 = pneg %p84
        %s154 = sand.u32 %s74, 1
        %s155 = scalar_lea.sflag [#allocation4], %s154
        %s156 = sand.u32 %s74, 1
        %s157 = smul.addr %s156, 8
        %s158 = scalar_lea.vmem [#allocation5], %s157
        %v159 = vld [vmem:[%s138] sm:$0xff]
        %v160 = vld [vmem:[%s1] sm:$0x1]
        %v161 = vmul.f32 %v159, %v159
        %vm162 = vcmask 261120
        %v163 = vsel %vm162, %v161, 0.0
        %164 = vadd.xlane.f32.xlu0 %v163
        %v165 = vpop.xlane.xlu0 %164
        %v166 = vrcp.pop 32.0
        %v167 = vmul.f32 %v165, %v166
        %v168 = vrsqrt.pop %v167
        %v169 = vmul.f32 %v167, %v168
        %vm170 = vcmp.eq.f32.partialorder %v167, inf
        %v171 = vsel %vm170, %v167, %v169
        %vm172 = vcmp.eq.f32.partialorder %v167, 0.0
        %v173 = vand.u32 %v167, 2147483648
        %v174 = vsel %vm172, %v173, %v171
        %v175 = vadd.f32 %v174, 1e-06
        %v176 = vrcp.pop %v175
        %v177 = vmul.f32 1.0, %v176
        %v178 = vmul.f32 %v159, %v177
        %v180 = vlaneseq
        %v181 = vshrl.u32 %v180, 7
        %v182 = vsub.s32 0, %v181
        %v183 = vrot.slane %v160, %v182
        %v185 = vmul.f32 %v178, %v183
        %186 = vst.msk [vmem:[%s158] sm:$0xff] %vm162, %v185
        %s187 = sand.u32 %s74, 1
        %s188 = scalar_lea.sflag [#allocation4], %s187
        %s189 = sand.u32 %s74, 1
        %s190 = smul.addr %s189, 8
        %s191 = scalar_lea.vmem [#allocation5], %s190
        // Predicated region
        $region33: #{tpu_custom_call.1} parent=27 // pred_check
          %p192 = pneg %p84
        $region34: #{tpu_custom_call.1} parent=27 // pred_check_branch
          %194 = sbr.rel (%p192) target = $region36
        $region35: #{tpu_custom_call.1} parent=27 // pred_region
          %s196 = ssub.s32 128, 128
          %197 = vsyncadd %s188, %s196
          %s198 = smul.addr %s19, 128
          %s199 = scalar_lea.hbm %s2, %s198
          %s201 = sshll.u32 %s191, 4
          %s202 = int_to_ptr.vmem [resolvable:$true] %s201
          %204 = dma.vmem_to_hbm [thread:$0]  %s202, 128, %s199, %s188
        $region36: #{tpu_custom_call.1} parent=27 // pred_fallthru
          _
      $region28: #{tpu_custom_call.1} parent=5 // pred_fallthru
        _
      %p205 = scmp.le.s32.totalorder 2, %s14
      // Predicated region
      $region37: #{tpu_custom_call.1} parent=5 // pred_check
        %p206 = pneg %p205
      $region38: #{tpu_custom_call.1} parent=5 // pred_check_branch
        %208 = sbr.rel (%p206) target = $region40
      $region39: #{tpu_custom_call.1} parent=5 // pred_region
        %s209 = ssub.s32 %s14, 2
        // Predicated region
        $region41: #{tpu_custom_call.1} parent=39 // pred_check
          %p210 = pneg %p90
        $region42: #{tpu_custom_call.1} parent=39 // pred_check_branch
          %212 = sbr.rel (%p210) target = $region44
        $region43: #{tpu_custom_call.1} parent=39 // pred_region
          %s213 = sand.u32 %s75, 1
          %s214 = scalar_lea.sflag [#allocation4], %s213
          %s215 = sand.u32 %s75, 1
          %s216 = smul.addr %s215, 8
          %s217 = scalar_lea.vmem [#allocation5], %s216
          %218 = dma.done %s214, 128
        $region44: #{tpu_custom_call.1} parent=39 // pred_fallthru
          _
      $region40: #{tpu_custom_call.1} parent=5 // pred_fallthru
        _
    $region6: #{tpu_custom_call.1} parent=1 // loop_footer
      %s18 = sadd.s32 1, %s14
    $region7: #{tpu_custom_call.1} parent=1 // loop_footer_branch
      %13 = sbr.rel target = $region3
    $region8: #{tpu_custom_call.1} parent=1 // loop_exit
      _
    %219 = vsyncpa [#allocation3], 1
    %s220 = scalar_lea.sflag [#allocation3], 1
    %221 = vsyncpa %s220, 1
    %222 = vsyncpa [#allocation4], 1
    %s223 = scalar_lea.sflag [#allocation4], 1
    %224 = vsyncpa %s223, 1

</llo_original>
